<compile_context>
chip_gen: v5e
topology: v5e:2x2
jax: 0.10.0
libtpu: 0.0.40
codegen_flags: <defaults>
</compile_context>

<pallas_src>
import functools

import jax
import jax.numpy as jnp
from jax.experimental import pallas as pl
from jax.experimental.pallas import tpu as pltpu

HIDDEN = 128      # per-branch hidden width (matches the PyTorch module)
OUT_PAD = 128     # lane-dense output slab width (>= n_actions + 1)


def _round_up(x, m):
    return ((x + m - 1) // m) * m


def _actor_critic_kernel(x_ref, w1_ref, b1_ref, w2_ref, b2_ref, out_ref):
    # x: (tile_b, D); w1: (D, 2H); b1: (1, 2H); w2: (2H, OUT_PAD); b2: (1, OUT_PAD)
    x = x_ref[...]

    # Fused first layer: h[:, :H] = relu(pi1 pre-act), h[:, H:] = relu(v1 pre-act)
    h = jnp.dot(x, w1_ref[...], preferred_element_type=jnp.float32)
    h = jnp.maximum(h + b1_ref[...], 0.0)

    # Fused block-diagonal heads: columns [0, A) hold pi, column A holds v.
    out = jnp.dot(h, w2_ref[...], preferred_element_type=jnp.float32) + b2_ref[...]
    out_ref[...] = out.astype(out_ref.dtype)


@functools.partial(jax.jit, static_argnames=("tile_b",))
def actor_critic_forward(state, params, *, tile_b=512):
    """ActorCritic forward pass in one Pallas kernel.

    state: (B, D) float32
    params: dict from init_params
    returns: (pi (B, n_actions), v (B, 1))
    """
    B, D = state.shape
    H = params["w_pi"].shape[0]
    A = params["w_pi"].shape[1]
    assert H == HIDDEN and A + 1 <= OUT_PAD

    # --- Fuse weights in the wrapper (cheap, constant-folded by XLA). ---
    w1 = jnp.concatenate([params["w_pi1"], params["w_v1"]], axis=1)   # (D, 2H)
    b1 = jnp.concatenate([params["b_pi1"], params["b_v1"]], axis=1)   # (1, 2H)

    w2 = jnp.zeros((2 * H, OUT_PAD), jnp.float32)                     # (2H, 128)
    w2 = w2.at[:H, :A].set(params["w_pi"])                            # pi head
    w2 = w2.at[H:, A:A + 1].set(params["w_v"])                        # v head
    b2 = jnp.zeros((1, OUT_PAD), jnp.float32)
    b2 = b2.at[:, :A].set(params["b_pi"])
    b2 = b2.at[:, A:A + 1].set(params["b_v"])

    # --- Batch tiling: pad rows to a sublane multiple, grid over row tiles. ---
    pad_b = _round_up(max(B, 8), 8)
    if pad_b <= tile_b:
        tile = pad_b                      # single grid step, no padding waste
    else:
        tile = tile_b
        pad_b = _round_up(B, tile)
    x = state if pad_b == B else jnp.pad(state, ((0, pad_b - B), (0, 0)))

    grid = (pad_b // tile,)

    flops = 2 * pad_b * (D * 2 * H + 2 * H * OUT_PAD)
    bytes_accessed = 4 * (pad_b * D + D * 2 * H + 2 * H
                          + 2 * H * OUT_PAD + OUT_PAD + pad_b * OUT_PAD)

    out = pl.pallas_call(
        _actor_critic_kernel,
        out_shape=jax.ShapeDtypeStruct((pad_b, OUT_PAD), jnp.float32),
        grid=grid,
        in_specs=[
            pl.BlockSpec((tile, D), lambda i: (i, 0)),          # state rows per step
            pl.BlockSpec((D, 2 * H), lambda i: (0, 0)),         # weights: VMEM-resident
            pl.BlockSpec((1, 2 * H), lambda i: (0, 0)),
            pl.BlockSpec((2 * H, OUT_PAD), lambda i: (0, 0)),
            pl.BlockSpec((1, OUT_PAD), lambda i: (0, 0)),
        ],
        out_specs=pl.BlockSpec((tile, OUT_PAD), lambda i: (i, 0)),
        compiler_params=pltpu.CompilerParams(
            dimension_semantics=("parallel",)),                 # 2-TC sharding on v7x
        cost_estimate=pl.CostEstimate(
            flops=flops, transcendentals=0, bytes_accessed=bytes_accessed),
    )(x, w1, b1, w2, b2)

    pi = out[:B, :A]
    v = out[:B, A:A + 1]
    return pi, v


def init_params(key, input_dims, n_actions, hidden=HIDDEN):
    """Deterministic init mimicking PyTorch nn.Linear (uniform +/- 1/sqrt(fan_in))."""
    ks = jax.random.split(key, 8)

    def linear(kw, kb, fan_in, fan_out):
        bound = 1.0 / jnp.sqrt(jnp.float32(fan_in))
        w = jax.random.uniform(kw, (fan_in, fan_out), jnp.float32, -bound, bound)
        b = jax.random.uniform(kb, (1, fan_out), jnp.float32, -bound, bound)
        return w, b

    w_pi1, b_pi1 = linear(ks[0], ks[1], input_dims, hidden)
    w_v1, b_v1 = linear(ks[2], ks[3], input_dims, hidden)
    w_pi, b_pi = linear(ks[4], ks[5], hidden, n_actions)
    w_v, b_v = linear(ks[6], ks[7], hidden, 1)
    return {
        "w_pi1": w_pi1, "b_pi1": b_pi1,
        "w_v1": w_v1, "b_v1": b_v1,
        "w_pi": w_pi, "b_pi": b_pi,
        "w_v": w_v, "b_v": b_v,
    }


def actor_critic_reference(state, params):
    """Plain-JAX reference of the same forward pass (for verification)."""
    pi1 = jax.nn.relu(state @ params["w_pi1"] + params["b_pi1"])
    v1 = jax.nn.relu(state @ params["w_v1"] + params["b_v1"])
    pi = pi1 @ params["w_pi"] + params["b_pi"]
    v = v1 @ params["w_v"] + params["b_v"]
    return pi, v


if __name__ == "__main__":
    # Small shapes consistent with the module: input_dims=16, n_actions=4, batch=8.
    B, D, A = 8, 16, 4

    key = jax.random.PRNGKey(0)
    k_params, k_state = jax.random.split(key)
    params = init_params(k_params, input_dims=D, n_actions=A)
    state = jax.random.normal(k_state, (B, D), dtype=jnp.float32)

    pi, v = actor_critic_forward(state, params)
    pi, v = jax.block_until_ready((pi, v))

    pi_ref, v_ref = actor_critic_reference(state, params)
    assert pi.shape == (B, A) and v.shape == (B, 1)
    assert jnp.allclose(pi, pi_ref, atol=1e-5, rtol=1e-5)
    assert jnp.allclose(v, v_ref, atol=1e-5, rtol=1e-5)

    # Also exercise the batched/grid path (multiple tiles, padded batch).
    big_state = jax.random.normal(jax.random.PRNGKey(1), (1200, D), dtype=jnp.float32)
    pi_b, v_b = jax.block_until_ready(actor_critic_forward(big_state, params))
    pi_br, v_br = actor_critic_reference(big_state, params)
    assert pi_b.shape == (1200, A) and v_b.shape == (1200, 1)
    assert jnp.allclose(pi_b, pi_br, atol=1e-4, rtol=1e-4)
    assert jnp.allclose(v_b, v_br, atol=1e-4, rtol=1e-4)

    print("KERNEL_OK")
</pallas_src>

<mosaic_0001>
module attributes {stable_mosaic.version = 11 : i64} {
  func.func @_actor_critic_kernel(%arg0: i32, %arg1: memref<8x16xf32, #tpu.memory_space<vmem>>, %arg2: memref<16x256xf32, #tpu.memory_space<vmem>>, %arg3: memref<1x256xf32, #tpu.memory_space<vmem>>, %arg4: memref<256x128xf32, #tpu.memory_space<vmem>>, %arg5: memref<1x128xf32, #tpu.memory_space<vmem>>, %arg6: memref<8x128xf32, #tpu.memory_space<vmem>>) attributes {dimension_semantics = [#tpu.dimension_semantics<parallel>], iteration_bounds = array<i64: 1>, scalar_prefetch = 0 : i64, scratch_operands = 0 : i64, tpu.core_type = #tpu.core_type<tc>, window_params = [{transform_indices = @transform_0, window_bounds = array<i64: 8, 16>}, {pipeline_mode = #tpu.pipeline_mode<synchronous>, transform_indices = @transform_1, window_bounds = array<i64: 16, 256>}, {pipeline_mode = #tpu.pipeline_mode<synchronous>, transform_indices = @transform_2, window_bounds = array<i64: 1, 256>}, {pipeline_mode = #tpu.pipeline_mode<synchronous>, transform_indices = @transform_3, window_bounds = array<i64: 256, 128>}, {pipeline_mode = #tpu.pipeline_mode<synchronous>, transform_indices = @transform_4, window_bounds = array<i64: 1, 128>}, {transform_indices = @transform_5, window_bounds = array<i64: 8, 128>}]} {
    %c0 = arith.constant 0 : index
    %c0_0 = arith.constant 0 : index
    %0 = vector.load %arg1[%c0, %c0_0] : memref<8x16xf32, #tpu.memory_space<vmem>>, vector<8x16xf32>
    %c0_1 = arith.constant 0 : index
    %c0_2 = arith.constant 0 : index
    %1 = vector.load %arg2[%c0_1, %c0_2] : memref<16x256xf32, #tpu.memory_space<vmem>>, vector<16x256xf32>
    %cst = arith.constant dense<0.000000e+00> : vector<8x256xf32>
    %2 = tpu.matmul %0, %1, %cst {dimension_numbers = #tpu.dot_dimension_numbers<[1], [0], [0], [1], [0, 0, 1, 1], [], []>} : vector<8x16xf32>, vector<16x256xf32>, vector<8x256xf32> -> vector<8x256xf32>
    %c0_3 = arith.constant 0 : index
    %c0_4 = arith.constant 0 : index
    %3 = vector.load %arg3[%c0_3, %c0_4] : memref<1x256xf32, #tpu.memory_space<vmem>>, vector<1x256xf32>
    %4 = vector.broadcast %3 : vector<1x256xf32> to vector<8x256xf32>
    %5 = arith.addf %2, %4 : vector<8x256xf32>
    %cst_5 = arith.constant 0.000000e+00 : f32
    %6 = vector.broadcast %cst_5 : f32 to vector<8x256xf32>
    %7 = arith.maximumf %5, %6 : vector<8x256xf32>
    %c0_6 = arith.constant 0 : index
    %c0_7 = arith.constant 0 : index
    %8 = vector.load %arg4[%c0_6, %c0_7] : memref<256x128xf32, #tpu.memory_space<vmem>>, vector<256x128xf32>
    %cst_8 = arith.constant dense<0.000000e+00> : vector<8x128xf32>
    %9 = tpu.matmul %7, %8, %cst_8 {dimension_numbers = #tpu.dot_dimension_numbers<[1], [0], [0], [1], [0, 0, 1, 1], [], []>} : vector<8x256xf32>, vector<256x128xf32>, vector<8x128xf32> -> vector<8x128xf32>
    %c0_9 = arith.constant 0 : index
    %c0_10 = arith.constant 0 : index
    %10 = vector.load %arg5[%c0_9, %c0_10] : memref<1x128xf32, #tpu.memory_space<vmem>>, vector<1x128xf32>
    %11 = vector.broadcast %10 : vector<1x128xf32> to vector<8x128xf32>
    %12 = arith.addf %9, %11 : vector<8x128xf32>
    %c0_11 = arith.constant 0 : index
    %c0_12 = arith.constant 0 : index
    %13 = vector.load %arg6[%c0_11, %c0_12] : memref<8x128xf32, #tpu.memory_space<vmem>>, vector<8x128xf32>
    tpu.vector_store %arg6[%c0_11, %c0_12], %12 {strides = array<i32>} : memref<8x128xf32, #tpu.memory_space<vmem>>, vector<8x128xf32>,
    return
  }
  func.func @transform_0(%arg0: i32) -> (i32, i32) {
    %c0_i32 = arith.constant 0 : i32
    %c0_i32_0 = arith.constant 0 : i32
    return %arg0, %c0_i32 : i32, i32
  }
  func.func @transform_1(%arg0: i32) -> (i32, i32) {
    %c0_i32 = arith.constant 0 : i32
    %c0_i32_0 = arith.constant 0 : i32
    %c0_i32_1 = arith.constant 0 : i32
    return %c0_i32, %c0_i32_0 : i32, i32
  }
  func.func @transform_2(%arg0: i32) -> (i32, i32) {
    %c0_i32 = arith.constant 0 : i32
    %c0_i32_0 = arith.constant 0 : i32
    %c0_i32_1 = arith.constant 0 : i32
    return %c0_i32, %c0_i32_0 : i32, i32
  }
  func.func @transform_3(%arg0: i32) -> (i32, i32) {
    %c0_i32 = arith.constant 0 : i32
    %c0_i32_0 = arith.constant 0 : i32
    %c0_i32_1 = arith.constant 0 : i32
    return %c0_i32, %c0_i32_0 : i32, i32
  }
  func.func @transform_4(%arg0: i32) -> (i32, i32) {
    %c0_i32 = arith.constant 0 : i32
    %c0_i32_0 = arith.constant 0 : i32
    %c0_i32_1 = arith.constant 0 : i32
    return %c0_i32, %c0_i32_0 : i32, i32
  }
  func.func @transform_5(%arg0: i32) -> (i32, i32) {
    %c0_i32 = arith.constant 0 : i32
    %c0_i32_0 = arith.constant 0 : i32
    return %arg0, %c0_i32 : i32, i32
  }
}

</mosaic_0001>

<llo_original>
// kernel: actor_critic_forward.1
$region0: #{actor_critic_forward.1}
  #allocation0 [shape = 'u32[]', space=smem, size = 0x4, offset = 0x4, fixed_abs, tag = 'smem constant byte address 0x4 - core index']
  #allocation1 [shape = 'u32[72,128]{1,0:T(1,128)}', space=vmem, size = 0x9000, scoped, tag = 'internal scratch']
  %s0 = inlined_call_operand.vmem [shape: f32[8,16], index: 0, kind: input, shape index: {}]
  %s1 = inlined_call_operand.vmem [shape: f32[16,256], index: 1, kind: input, shape index: {}]
  %s2 = inlined_call_operand.vmem [shape: f32[1,256], index: 2, kind: input, shape index: {}]
  %s3 = inlined_call_operand.vmem [shape: f32[256,128], index: 3, kind: input, shape index: {}]
  %s4 = inlined_call_operand.vmem [shape: f32[1,128], index: 4, kind: input, shape index: {}]
  %s5 = inlined_call_operand.vmem [shape: f32[8,128], index: 5, kind: output, shape index: {}]
  %s6 = sld [smem:[#allocation0]]
  $region30: #{actor_critic_forward.1} parent=0
    _
  %s8 = ssub.s32 1, %s6
  %s9 = scalar_select 0, %s8, %s6
  // Predicated region
  $region2: #{actor_critic_forward.1} parent=0 // pred_check
    _
  $region3: #{actor_critic_forward.1} parent=0 // pred_check_branch
    %11 = sbr.rel (0) target = $region5
  $region4: #{actor_critic_forward.1} parent=0 // pred_region
    _
  $region5: #{actor_critic_forward.1} parent=0 // pred_fallthru
    _
  // Predicated region
  $region6: #{actor_critic_forward.1} parent=0 // pred_check
    _
  $region7: #{actor_critic_forward.1} parent=0 // pred_check_branch
    %13 = sbr.rel (0) target = $region9
  $region8: #{actor_critic_forward.1} parent=0 // pred_region
    _
  $region9: #{actor_critic_forward.1} parent=0 // pred_fallthru
    _
  // Predicated region
  $region10: #{actor_critic_forward.1} parent=0 // pred_check
    _
  $region11: #{actor_critic_forward.1} parent=0 // pred_check_branch
    %15 = sbr.rel (0) target = $region13
  $region12: #{actor_critic_forward.1} parent=0 // pred_region
    _
  $region13: #{actor_critic_forward.1} parent=0 // pred_fallthru
    _
  // Predicated region
  $region14: #{actor_critic_forward.1} parent=0 // pred_check
    _
  $region15: #{actor_critic_forward.1} parent=0 // pred_check_branch
    %17 = sbr.rel (0) target = $region17
  $region16: #{actor_critic_forward.1} parent=0 // pred_region
    _
  $region17: #{actor_critic_forward.1} parent=0 // pred_fallthru
    _
  // Predicated region
  $region18: #{actor_critic_forward.1} parent=0 // pred_check
    _
  $region19: #{actor_critic_forward.1} parent=0 // pred_check_branch
    %19 = sbr.rel (0) target = $region21
  $region20: #{actor_critic_forward.1} parent=0 // pred_region
    _
  $region21: #{actor_critic_forward.1} parent=0 // pred_fallthru
    _
  %v20 = vld [vmem:[%s0] sm:$0xff]
  %v21 = vld [vmem:[%s1] sm:$0xff]
  %v22 = vld [vmem:[%s1 + $0x8] sm:$0xff]
  %v23 = vld [vmem:[%s1 + $0x10] sm:$0xff]
  %v24 = vld [vmem:[%s1 + $0x18] sm:$0xff]
  %v25 = vld [vmem:[%s2] sm:$0x3]
  %v27 = vperm.slane %v25, 0
  %v28 = vperm.slane %v25, 1
  %vm31 = vcmask 130048
  %v33 = vsel %vm31, %v20, 0
  %35 = vmatpush.msra.mxu0 0.0
  %36 = vmatpush.msra.mxu0 0.0
  %37 = vmatpush.msra.mxu0 0.0
  %38 = vmatpush.msra.mxu0 0.0
  %39 = vmatpush.msra.mxu0 0.0
  %40 = vmatpush.msra.mxu0 0.0
  %41 = vmatpush.msra.mxu0 0.0
  %42 = vmatpush.msra.mxu0 0.0
  %43 = vmatpush.msra.mxu0 0.0
  %44 = vmatpush.msra.mxu0 0.0
  %45 = vmatpush.msra.mxu0 0.0
  %46 = vmatpush.msra.mxu0 0.0
  %47 = vmatpush.msra.mxu0 0.0
  %48 = vmatpush.msra.mxu0 0.0
  %49 = vmatpush.msra.mxu0 %v23
  %50 = vmatpush.msra.mxu0 %v21
  %51 = vmatmul.f32.gmra.mxu0 %v33
  %v52 = vpop.f32.mrf.mxu0
  %v53 = vadd.f32 %v27, %v52
  %54 = vdwg.mxu0
  %55 = vmatpush.msra.mxu0 0.0
  %56 = vmatpush.msra.mxu0 0.0
  %57 = vmatpush.msra.mxu0 0.0
  %58 = vmatpush.msra.mxu0 0.0
  %59 = vmatpush.msra.mxu0 0.0
  %60 = vmatpush.msra.mxu0 0.0
  %61 = vmatpush.msra.mxu0 0.0
  %62 = vmatpush.msra.mxu0 0.0
  %63 = vmatpush.msra.mxu0 0.0
  %64 = vmatpush.msra.mxu0 0.0
  %65 = vmatpush.msra.mxu0 0.0
  %66 = vmatpush.msra.mxu0 0.0
  %67 = vmatpush.msra.mxu0 0.0
  %68 = vmatpush.msra.mxu0 0.0
  %69 = vmatpush.msra.mxu0 %v24
  %70 = vmatpush.msra.mxu0 %v22
  %71 = vmatmul.f32.gmra.mxu0 %v33
  %v72 = vpop.f32.mrf.mxu0
  %v73 = vadd.f32 %v28, %v72
  %74 = vdwg.mxu0
  %v75 = vmax.f32 %v53, 0.0
  %v76 = vmax.f32 %v73, 0.0
  %v77 = vld [vmem:[%s3] sm:$0xff]
  %v78 = vld [vmem:[%s3 + $0x8] sm:$0xff]
  %v79 = vld [vmem:[%s3 + $0x10] sm:$0xff]
  %v80 = vld [vmem:[%s3 + $0x18] sm:$0xff]
  %v81 = vld [vmem:[%s3 + $0x20] sm:$0xff]
  %v82 = vld [vmem:[%s3 + $0x28] sm:$0xff]
  %v83 = vld [vmem:[%s3 + $0x30] sm:$0xff]
  %v84 = vld [vmem:[%s3 + $0x38] sm:$0xff]
  %v85 = vld [vmem:[%s3 + $0x40] sm:$0xff]
  %v86 = vld [vmem:[%s3 + $0x48] sm:$0xff]
  %v87 = vld [vmem:[%s3 + $0x50] sm:$0xff]
  %v88 = vld [vmem:[%s3 + $0x58] sm:$0xff]
  %v89 = vld [vmem:[%s3 + $0x60] sm:$0xff]
  %v90 = vld [vmem:[%s3 + $0x68] sm:$0xff]
  %v91 = vld [vmem:[%s3 + $0x70] sm:$0xff]
  %v92 = vld [vmem:[%s3 + $0x78] sm:$0xff]
  %v93 = vld [vmem:[%s3 + $0x80] sm:$0xff]
  %v94 = vld [vmem:[%s3 + $0x88] sm:$0xff]
  %v95 = vld [vmem:[%s3 + $0x90] sm:$0xff]
  %v96 = vld [vmem:[%s3 + $0x98] sm:$0xff]
  %v97 = vld [vmem:[%s3 + $0xa0] sm:$0xff]
  %v98 = vld [vmem:[%s3 + $0xa8] sm:$0xff]
  %v99 = vld [vmem:[%s3 + $0xb0] sm:$0xff]
  %v100 = vld [vmem:[%s3 + $0xb8] sm:$0xff]
  %v101 = vld [vmem:[%s3 + $0xc0] sm:$0xff]
  %v102 = vld [vmem:[%s3 + $0xc8] sm:$0xff]
  %v103 = vld [vmem:[%s3 + $0xd0] sm:$0xff]
  %v104 = vld [vmem:[%s3 + $0xd8] sm:$0xff]
  %v105 = vld [vmem:[%s3 + $0xe0] sm:$0xff]
  %v106 = vld [vmem:[%s3 + $0xe8] sm:$0xff]
  %v107 = vld [vmem:[%s3 + $0xf0] sm:$0xff]
  %v108 = vld [vmem:[%s3 + $0xf8] sm:$0xff]
  %v109 = vld [vmem:[%s4] sm:$0x1]
  %v111 = vperm.slane %v109, 0
  %113 = vmatpush.msra.mxu0 %v92
  %114 = vmatpush.msra.mxu0 %v91
  %115 = vmatpush.msra.mxu0 %v90
  %116 = vmatpush.msra.mxu0 %v89
  %117 = vmatpush.msra.mxu0 %v88
  %118 = vmatpush.msra.mxu0 %v87
  %119 = vmatpush.msra.mxu0 %v86
  %120 = vmatpush.msra.mxu0 %v85
  %121 = vmatpush.msra.mxu0 %v84
  %122 = vmatpush.msra.mxu0 %v83
  %123 = vmatpush.msra.mxu0 %v82
  %124 = vmatpush.msra.mxu0 %v81
  %125 = vmatpush.msra.mxu0 %v80
  %126 = vmatpush.msra.mxu0 %v79
  %127 = vmatpush.msra.mxu0 %v78
  %128 = vmatpush.msra.mxu0 %v77
  %129 = vmatmul.f32.gmra.mxu0 %v75
  %v130 = vpop.f32.mrf.mxu0
  %v131 = vadd.f32 %v111, %v130
  %132 = vdwg.mxu0
  %133 = vmatpush.msra.mxu0 %v108
  %134 = vmatpush.msra.mxu0 %v107
  %135 = vmatpush.msra.mxu0 %v106
  %136 = vmatpush.msra.mxu0 %v105
  %137 = vmatpush.msra.mxu0 %v104
  %138 = vmatpush.msra.mxu0 %v103
  %139 = vmatpush.msra.mxu0 %v102
  %140 = vmatpush.msra.mxu0 %v101
  %141 = vmatpush.msra.mxu0 %v100
  %142 = vmatpush.msra.mxu0 %v99
  %143 = vmatpush.msra.mxu0 %v98
  %144 = vmatpush.msra.mxu0 %v97
  %145 = vmatpush.msra.mxu0 %v96
  %146 = vmatpush.msra.mxu0 %v95
  %147 = vmatpush.msra.mxu0 %v94
  %148 = vmatpush.msra.mxu0 %v93
  %149 = vmatmul.f32.gmra.mxu0 %v76
  %v150 = vpop.f32.mrf.mxu0
  %v151 = vadd.f32 %v131, %v150
  %152 = vdwg.mxu0
  %153 = vst [vmem:[%s5] sm:$0xff] %v151
  // Predicated region
  $region22: #{actor_critic_forward.1} parent=0 // pred_check
    _
  $region23: #{actor_critic_forward.1} parent=0 // pred_check_branch
    %155 = sbr.rel (0) target = $region25
  $region24: #{actor_critic_forward.1} parent=0 // pred_region
    _
  $region25: #{actor_critic_forward.1} parent=0 // pred_fallthru
    _
  // Predicated region
  $region26: #{actor_critic_forward.1} parent=0 // pred_check
    _
  $region27: #{actor_critic_forward.1} parent=0 // pred_check_branch
    %157 = sbr.rel (0) target = $region29
  $region28: #{actor_critic_forward.1} parent=0 // pred_region
    _
  $region29: #{actor_critic_forward.1} parent=0 // pred_fallthru
    _

</llo_original>
